<compile_context>
chip_gen: v7x
topology: tpu7x:2x2x1
jax: 0.10.0
libtpu: 0.0.40
codegen_flags: <defaults>
</compile_context>

<pallas_src>
import jax
import jax.numpy as jnp
from jax import lax
from jax.experimental import pallas as pl
from jax.experimental.pallas import tpu as pltpu


# ---------------------------------------------------------------------------
# Kernel
# ---------------------------------------------------------------------------
def _make_kernel(num_blocks, gb, s, C, transpose_out, unroll):
    def kernel(x_ref, w1_ref, b1_ref, w2_ref, b2_ref, w3_ref, b3_ref, o_ref):
        # x_ref: [gb*s, d] f32 (gb groups of s points, rows flattened)
        # w1: [d, C] bf16, b1: [1, C] f32
        # w2/w3: [nb, C, C] bf16, b2/b3: [nb, 1, C] f32
        # o_ref: [gb, C] f32  (or [C, gb] when transpose_out)
        x = x_ref[...].astype(jnp.bfloat16)   # VPU cast in-kernel, hidden under MXU

        # transfer = ConvBNReLU1D(in_channels, out_channels): conv1x1+BN+ReLU
        y = jnp.maximum(
            jnp.dot(x, w1_ref[...], preferred_element_type=jnp.float32)
            + b1_ref[...],
            0.0,
        )

        # operation = blocks x ConvBNReLURes1D(C, groups=1, res_expansion=1):
        #   act(net2(net1(y)) + y), net1 = conv+BN+ReLU, net2 = conv+BN
        def res_block(i, y):
            h = jnp.maximum(
                jnp.dot(y.astype(jnp.bfloat16), w2_ref[i],
                        preferred_element_type=jnp.float32) + b2_ref[i],
                0.0,
            )
            z = (
                jnp.dot(h.astype(jnp.bfloat16), w3_ref[i],
                        preferred_element_type=jnp.float32) + b3_ref[i]
            )
            return jnp.maximum(z + y, 0.0)

        if unroll:
            for i in range(num_blocks):        # short chains: static unroll
                y = res_block(i, y)
        else:
            y = lax.fori_loop(0, num_blocks, res_block, y)  # deep chains

        # adaptive_max_pool1d(., 1): per-group max over the s (point) axis.
        pooled = jnp.max(y.reshape(gb, s, C), axis=1)       # [gb, C] f32

        if transpose_out:
            # Lane-dense store for C < 128: small XLU transpose of the pooled
            # tile, store as [C, gb].
            o_ref[...] = pooled.T.astype(o_ref.dtype)
        else:
            o_ref[...] = pooled.astype(o_ref.dtype)

    return kernel


# ---------------------------------------------------------------------------
# VMEM-aware tiling plan
# ---------------------------------------------------------------------------
def _vmem_capacity_bytes():
    try:
        return int(pltpu.get_tpu_info().vmem_capacity_bytes)
    except Exception:
        return 64 << 20   # conservative (v7x per-TC VMEM)


def _vmem_need_bytes(gb, s, C, d, nb):
    rows = gb * s
    x_blk = rows * 128 * 4 * 2                    # f32 x tile, d lane-padded, dbl-buffered
    w_blk = 2 * 2 * (d * C + 2 * nb * C * C)      # bf16 weights, dbl-buffered
    b_blk = 2 * 4 * 8 * (C + 2 * nb * C)          # f32 biases, sublane-padded, dbl-buffered
    inter = rows * C * 20                          # f32 y/h/z + bf16 cast temps (+ slack)
    out_blk = gb * 128 * 4 * 2                     # output tile (lane-padded), dbl-buffered
    return x_blk + w_blk + b_blk + inter + out_blk


def _plan_tiles(G, s, C, d, nb, vmem_cap):
    """Returns (gb, G_pad, transpose_out)."""
    budget = min(vmem_cap // 3, 32 << 20)          # per-step working-set target
    w_fixed = 2 * 2 * (d * C + 2 * nb * C * C) + 2 * 4 * 8 * (C + 2 * nb * C)
    per_group = s * (128 * 4 * 2 + 20 * C) + 2 * 128 * 4
    gb_cap = max(1, (budget - w_fixed) // per_group)
    gb_cap = min(G, gb_cap, max(1, 8192 // max(s, 1)))   # cap MXU rows per step

    if gb_cap >= G:
        # Whole problem fits in one step: block dims equal full array dims,
        # so no alignment padding is needed.
        return G, G, (C < 128)

    # Multi-tile: transposed output needs gb % 128 == 0 for a lane-dense block.
    transpose_out = (C < 128) and (gb_cap >= 128)
    align = 128 if transpose_out else 8

    gb = max(align, (gb_cap // align) * align)
    # Leave >= 4 grid steps when G allows (megacore sharding + DMA overlap).
    if G >= 4 * align:
        gb = min(gb, max(align, ((G // 4) // align) * align))
    # Prefer an exact divisor of G so no whole-array pad of x is needed.
    for cand in range(gb, align - 1, -align):
        if G % cand == 0:
            return cand, G, transpose_out
    G_pad = pl.cdiv(G, gb) * gb
    return gb, G_pad, transpose_out


# ---------------------------------------------------------------------------
# Wrapper
# ---------------------------------------------------------------------------
def pre_extraction_forward(x, params, group_block=None):
    """x: [b, n, s, d] float32 -> [b, out_channels, n] float32."""
    w1, b1, w2, b2, w3, b3 = params
    b, n, s, d = x.shape
    G = b * n
    C = w1.shape[1]
    nb = w2.shape[0]

    vmem_cap = _vmem_capacity_bytes()
    if group_block is None:
        gb, G_pad, transpose_out = _plan_tiles(G, s, C, d, nb, vmem_cap)
    else:
        gb = group_block
        G_pad = pl.cdiv(G, gb) * gb
        transpose_out = (C < 128) and (gb % 128 == 0 or G_pad == gb)
    n_tiles = G_pad // gb

    # x stays f32; the kernel casts to bf16 (no separate XLA cast pass).
    x_flat = x.reshape(G * s, d)
    if G_pad != G:
        # Rare (only when no divisor-of-G block fits); padded groups only
        # affect their own, discarded, output rows.
        x_flat = jnp.pad(x_flat, ((0, (G_pad - G) * s), (0, 0)))

    w1b = w1.astype(jnp.bfloat16)
    w2b = w2.astype(jnp.bfloat16)
    w3b = w3.astype(jnp.bfloat16)

    flops = 2 * G_pad * s * (d * C + 2 * nb * C * C)
    bytes_accessed = (
        x_flat.size * 4
        + (w1b.size + w2b.size + w3b.size) * 2
        + (b1.size + b2.size + b3.size) * 4
        + G_pad * C * 4
    )

    need = _vmem_need_bytes(gb, s, C, d, nb)
    vmem_limit = int(min(vmem_cap - (4 << 20), max(2 * need, 32 << 20)))

    if transpose_out:
        out_shape = jax.ShapeDtypeStruct((C, G_pad), jnp.float32)
        out_spec = pl.BlockSpec((C, gb), lambda t: (0, t))
    else:
        out_shape = jax.ShapeDtypeStruct((G_pad, C), jnp.float32)
        out_spec = pl.BlockSpec((gb, C), lambda t: (t, 0))

    kernel = _make_kernel(nb, gb, s, C, transpose_out, unroll=(nb <= 4))

    out = pl.pallas_call(
        kernel,
        out_shape=out_shape,
        grid_spec=pltpu.PrefetchScalarGridSpec(
            num_scalar_prefetch=0,
            grid=(n_tiles,),
            in_specs=[
                pl.BlockSpec((gb * s, d), lambda t: (t, 0)),
                # Weights/biases: constant index maps -> resident across grid.
                pl.BlockSpec((d, C), lambda t: (0, 0)),
                pl.BlockSpec((1, C), lambda t: (0, 0)),
                pl.BlockSpec((nb, C, C), lambda t: (0, 0, 0)),
                pl.BlockSpec((nb, 1, C), lambda t: (0, 0, 0)),
                pl.BlockSpec((nb, C, C), lambda t: (0, 0, 0)),
                pl.BlockSpec((nb, 1, C), lambda t: (0, 0, 0)),
            ],
            out_specs=out_spec,
        ),
        compiler_params=pltpu.CompilerParams(
            dimension_semantics=("parallel",),
            vmem_limit_bytes=vmem_limit,
        ),
        cost_estimate=pl.CostEstimate(
            flops=flops, transcendentals=0, bytes_accessed=bytes_accessed),
    )(x_flat, w1b, b1, w2b, b2, w3b, b3)

    if transpose_out:
        # [C, G] -> [C, b, n] -> [b, C, n] (minor dim n untouched)
        return out[:, :G].reshape(C, b, n).transpose(1, 0, 2)
    # [G, C] -> [b, n, C] -> [b, C, n]
    return out[:G].reshape(b, n, C).transpose(0, 2, 1)


# ---------------------------------------------------------------------------
# Deterministic parameter construction (Conv1d(k=1) + eval-mode BN folded).
# ---------------------------------------------------------------------------
def _init_conv_bn(key, cin, cout):
    kw, kb, kg, kbe, km, kv = jax.random.split(key, 6)
    w = jax.random.normal(kw, (cout, cin), jnp.float32) / jnp.sqrt(float(cin))
    bias = 0.1 * jax.random.normal(kb, (cout,), jnp.float32)
    gamma = 1.0 + 0.1 * jax.random.normal(kg, (cout,), jnp.float32)
    beta = 0.1 * jax.random.normal(kbe, (cout,), jnp.float32)
    mean = 0.1 * jax.random.normal(km, (cout,), jnp.float32)
    var = jnp.abs(jax.random.normal(kv, (cout,), jnp.float32)) + 0.5
    eps = 1e-5
    scale = gamma / jnp.sqrt(var + eps)
    w_folded = (w * scale[:, None]).T          # [cin, cout], channels-last matmul
    b_folded = scale * (bias - mean) + beta    # [cout]
    return w_folded, b_folded


def init_params(key, in_channels, out_channels, blocks=1):
    keys = jax.random.split(key, 1 + 2 * blocks)
    w1, b1 = _init_conv_bn(keys[0], in_channels, out_channels)
    w2s, b2s, w3s, b3s = [], [], [], []
    for i in range(blocks):
        w2, b2 = _init_conv_bn(keys[1 + 2 * i], out_channels, out_channels)
        w3, b3 = _init_conv_bn(keys[2 + 2 * i], out_channels, out_channels)
        w2s.append(w2); b2s.append(b2[None, :])
        w3s.append(w3); b3s.append(b3[None, :])
    return (
        w1,
        b1[None, :],
        jnp.stack(w2s),            # [blocks, C, C]
        jnp.stack(b2s),            # [blocks, 1, C]
        jnp.stack(w3s),
        jnp.stack(b3s),
    )


def reference_forward(x, params):
    """Pure-JAX reference mirroring the PyTorch forward (eval-mode BN) with
    the same bf16-operand / f32-accumulate numerics as the kernel."""
    w1, b1, w2, b2, w3, b3 = params
    b, n, s, d = x.shape
    xg = x.reshape(b * n, s, d).astype(jnp.bfloat16)
    y = jnp.maximum(
        jnp.einsum("gsd,dc->gsc", xg, w1.astype(jnp.bfloat16),
                   preferred_element_type=jnp.float32) + b1[None], 0.0)
    for i in range(w2.shape[0]):
        h = jnp.maximum(
            jnp.einsum("gsc,ce->gse", y.astype(jnp.bfloat16),
                       w2[i].astype(jnp.bfloat16),
                       preferred_element_type=jnp.float32) + b2[i][None], 0.0)
        z = jnp.einsum("gse,ec->gsc", h.astype(jnp.bfloat16),
                       w3[i].astype(jnp.bfloat16),
                       preferred_element_type=jnp.float32) + b3[i][None]
        y = jnp.maximum(z + y, 0.0)
    pooled = jnp.max(y, axis=1)                       # [G, C]
    C = pooled.shape[-1]
    return pooled.reshape(b, n, C).transpose(0, 2, 1)


if __name__ == "__main__":
    # Small shapes consistent with the module: channels=4 -> d = 3 + 2*4 = 11
    b, n, s, channels, out_channels, blocks = 2, 8, 16, 4, 32, 1
    d_in = 3 + 2 * channels

    key = jax.random.PRNGKey(0)
    kx, kp = jax.random.split(key)
    x = jax.random.normal(kx, (b, n, s, d_in), jnp.float32)
    params = init_params(kp, d_in, out_channels, blocks=blocks)

    out = pre_extraction_forward(x, params)
    out = jax.block_until_ready(out)

    ref = reference_forward(x, params)
    assert out.shape == (b, out_channels, n), out.shape
    assert jnp.allclose(out, ref, atol=1e-2, rtol=1e-2), float(
        jnp.max(jnp.abs(out - ref))
    )
    print("KERNEL_OK")
</pallas_src>

<mosaic_0001>
module attributes {stable_mosaic.version = 11 : i64} {
  func.func @kernel(%arg0: i32, %arg1: memref<256x11xf32, #tpu.memory_space<vmem>>, %arg2: memref<11x32xbf16, #tpu.memory_space<vmem>>, %arg3: memref<1x32xf32, #tpu.memory_space<vmem>>, %arg4: memref<1x32x32xbf16, #tpu.memory_space<vmem>>, %arg5: memref<1x1x32xf32, #tpu.memory_space<vmem>>, %arg6: memref<1x32x32xbf16, #tpu.memory_space<vmem>>, %arg7: memref<1x1x32xf32, #tpu.memory_space<vmem>>, %arg8: memref<32x16xf32, #tpu.memory_space<vmem>>) attributes {dimension_semantics = [#tpu.dimension_semantics<parallel>], iteration_bounds = array<i64: 1>, scalar_prefetch = 0 : i64, scratch_operands = 0 : i64, tpu.core_type = #tpu.core_type<tc>, window_params = [{transform_indices = @transform_0, window_bounds = array<i64: 256, 11>}, {pipeline_mode = #tpu.pipeline_mode<synchronous>, transform_indices = @transform_1, window_bounds = array<i64: 11, 32>}, {pipeline_mode = #tpu.pipeline_mode<synchronous>, transform_indices = @transform_2, window_bounds = array<i64: 1, 32>}, {pipeline_mode = #tpu.pipeline_mode<synchronous>, transform_indices = @transform_3, window_bounds = array<i64: 1, 32, 32>}, {pipeline_mode = #tpu.pipeline_mode<synchronous>, transform_indices = @transform_4, window_bounds = array<i64: 1, 1, 32>}, {pipeline_mode = #tpu.pipeline_mode<synchronous>, transform_indices = @transform_5, window_bounds = array<i64: 1, 32, 32>}, {pipeline_mode = #tpu.pipeline_mode<synchronous>, transform_indices = @transform_6, window_bounds = array<i64: 1, 1, 32>}, {transform_indices = @transform_7, window_bounds = array<i64: 32, 16>}]} {
    %c0 = arith.constant 0 : index
    %c0_0 = arith.constant 0 : index
    %0 = vector.load %arg1[%c0, %c0_0] : memref<256x11xf32, #tpu.memory_space<vmem>>, vector<256x11xf32>
    %1 = arith.truncf %0 : vector<256x11xf32> to vector<256x11xbf16>
    %c0_1 = arith.constant 0 : index
    %c0_2 = arith.constant 0 : index
    %2 = vector.load %arg2[%c0_1, %c0_2] : memref<11x32xbf16, #tpu.memory_space<vmem>>, vector<11x32xbf16>
    %cst = arith.constant dense<0.000000e+00> : vector<256x32xf32>
    %3 = tpu.matmul %1, %2, %cst {dimension_numbers = #tpu.dot_dimension_numbers<[1], [0], [0], [1], [0, 0, 1, 1], [], []>} : vector<256x11xbf16>, vector<11x32xbf16>, vector<256x32xf32> -> vector<256x32xf32>
    %c0_3 = arith.constant 0 : index
    %c0_4 = arith.constant 0 : index
    %4 = vector.load %arg3[%c0_3, %c0_4] : memref<1x32xf32, #tpu.memory_space<vmem>>, vector<1x32xf32>
    %5 = vector.broadcast %4 : vector<1x32xf32> to vector<256x32xf32>
    %6 = arith.addf %3, %5 : vector<256x32xf32>
    %cst_5 = arith.constant 0.000000e+00 : f32
    %7 = vector.broadcast %cst_5 : f32 to vector<256x32xf32>
    %8 = arith.maximumf %6, %7 : vector<256x32xf32>
    %9 = arith.truncf %8 : vector<256x32xf32> to vector<256x32xbf16>
    %c0_6 = arith.constant 0 : index
    %c0_7 = arith.constant 0 : index
    %c0_8 = arith.constant 0 : index
    %10 = vector.load %arg4[%c0_6, %c0_7, %c0_8] : memref<1x32x32xbf16, #tpu.memory_space<vmem>>, vector<1x32x32xbf16>
    %11 = vector.shape_cast %10 : vector<1x32x32xbf16> to vector<32x32xbf16>
    %cst_9 = arith.constant dense<0.000000e+00> : vector<256x32xf32>
    %12 = tpu.matmul %9, %11, %cst_9 {dimension_numbers = #tpu.dot_dimension_numbers<[1], [0], [0], [1], [0, 0, 1, 1], [], []>} : vector<256x32xbf16>, vector<32x32xbf16>, vector<256x32xf32> -> vector<256x32xf32>
    %c0_10 = arith.constant 0 : index
    %c0_11 = arith.constant 0 : index
    %c0_12 = arith.constant 0 : index
    %13 = vector.load %arg5[%c0_10, %c0_11, %c0_12] : memref<1x1x32xf32, #tpu.memory_space<vmem>>, vector<1x1x32xf32>
    %14 = vector.shape_cast %13 : vector<1x1x32xf32> to vector<1x32xf32>
    %15 = vector.broadcast %14 : vector<1x32xf32> to vector<256x32xf32>
    %16 = arith.addf %12, %15 : vector<256x32xf32>
    %cst_13 = arith.constant 0.000000e+00 : f32
    %17 = vector.broadcast %cst_13 : f32 to vector<256x32xf32>
    %18 = arith.maximumf %16, %17 : vector<256x32xf32>
    %19 = arith.truncf %18 : vector<256x32xf32> to vector<256x32xbf16>
    %c0_14 = arith.constant 0 : index
    %c0_15 = arith.constant 0 : index
    %c0_16 = arith.constant 0 : index
    %20 = vector.load %arg6[%c0_14, %c0_15, %c0_16] : memref<1x32x32xbf16, #tpu.memory_space<vmem>>, vector<1x32x32xbf16>
    %21 = vector.shape_cast %20 : vector<1x32x32xbf16> to vector<32x32xbf16>
    %cst_17 = arith.constant dense<0.000000e+00> : vector<256x32xf32>
    %22 = tpu.matmul %19, %21, %cst_17 {dimension_numbers = #tpu.dot_dimension_numbers<[1], [0], [0], [1], [0, 0, 1, 1], [], []>} : vector<256x32xbf16>, vector<32x32xbf16>, vector<256x32xf32> -> vector<256x32xf32>
    %c0_18 = arith.constant 0 : index
    %c0_19 = arith.constant 0 : index
    %c0_20 = arith.constant 0 : index
    %23 = vector.load %arg7[%c0_18, %c0_19, %c0_20] : memref<1x1x32xf32, #tpu.memory_space<vmem>>, vector<1x1x32xf32>
    %24 = vector.shape_cast %23 : vector<1x1x32xf32> to vector<1x32xf32>
    %25 = vector.broadcast %24 : vector<1x32xf32> to vector<256x32xf32>
    %26 = arith.addf %22, %25 : vector<256x32xf32>
    %27 = arith.addf %26, %8 : vector<256x32xf32>
    %cst_21 = arith.constant 0.000000e+00 : f32
    %28 = vector.broadcast %cst_21 : f32 to vector<256x32xf32>
    %29 = arith.maximumf %27, %28 : vector<256x32xf32>
    %30 = vector.shape_cast %29 : vector<256x32xf32> to vector<16x16x32xf32>
    %cst_22 = arith.constant dense<0xFF800000> : vector<16x32xf32>
    %31 = vector.multi_reduction <maximumf>, %30, %cst_22 [1] : vector<16x16x32xf32> to vector<16x32xf32>
    %32 = tpu.transpose %31, [1, 0] : vector<16x32xf32> -> vector<32x16xf32>
    %c0_23 = arith.constant 0 : index
    %c0_24 = arith.constant 0 : index
    %33 = vector.load %arg8[%c0_23, %c0_24] : memref<32x16xf32, #tpu.memory_space<vmem>>, vector<32x16xf32>
    tpu.vector_store %arg8[%c0_23, %c0_24], %32 {strides = array<i32>} : memref<32x16xf32, #tpu.memory_space<vmem>>, vector<32x16xf32>,
    return
  }
  func.func @transform_0(%arg0: i32) -> (i32, i32) {
    %c0_i32 = arith.constant 0 : i32
    %c0_i32_0 = arith.constant 0 : i32
    return %arg0, %c0_i32 : i32, i32
  }
  func.func @transform_1(%arg0: i32) -> (i32, i32) {
    %c0_i32 = arith.constant 0 : i32
    %c0_i32_0 = arith.constant 0 : i32
    %c0_i32_1 = arith.constant 0 : i32
    return %c0_i32, %c0_i32_0 : i32, i32
  }
  func.func @transform_2(%arg0: i32) -> (i32, i32) {
    %c0_i32 = arith.constant 0 : i32
    %c0_i32_0 = arith.constant 0 : i32
    %c0_i32_1 = arith.constant 0 : i32
    return %c0_i32, %c0_i32_0 : i32, i32
  }
  func.func @transform_3(%arg0: i32) -> (i32, i32, i32) {
    %c0_i32 = arith.constant 0 : i32
    %c0_i32_0 = arith.constant 0 : i32
    %c0_i32_1 = arith.constant 0 : i32
    %c0_i32_2 = arith.constant 0 : i32
    return %c0_i32, %c0_i32_0, %c0_i32_1 : i32, i32, i32
  }
  func.func @transform_4(%arg0: i32) -> (i32, i32, i32) {
    %c0_i32 = arith.constant 0 : i32
    %c0_i32_0 = arith.constant 0 : i32
    %c0_i32_1 = arith.constant 0 : i32
    %c0_i32_2 = arith.constant 0 : i32
    return %c0_i32, %c0_i32_0, %c0_i32_1 : i32, i32, i32
  }
  func.func @transform_5(%arg0: i32) -> (i32, i32, i32) {
    %c0_i32 = arith.constant 0 : i32
    %c0_i32_0 = arith.constant 0 : i32
    %c0_i32_1 = arith.constant 0 : i32
    %c0_i32_2 = arith.constant 0 : i32
    return %c0_i32, %c0_i32_0, %c0_i32_1 : i32, i32, i32
  }
  func.func @transform_6(%arg0: i32) -> (i32, i32, i32) {
    %c0_i32 = arith.constant 0 : i32
    %c0_i32_0 = arith.constant 0 : i32
    %c0_i32_1 = arith.constant 0 : i32
    %c0_i32_2 = arith.constant 0 : i32
    return %c0_i32, %c0_i32_0, %c0_i32_1 : i32, i32, i32
  }
  func.func @transform_7(%arg0: i32) -> (i32, i32) {
    %c0_i32 = arith.constant 0 : i32
    %c0_i32_0 = arith.constant 0 : i32
    return %c0_i32, %arg0 : i32, i32
  }
}

</mosaic_0001>

<llo_original>
// kernel: tpu_custom_call.1
$region0: #{tpu_custom_call.1}
  #allocation0 [shape = 'u32[]', space=smem, size = 0x4, offset = 0x4, fixed_abs, tag = 'smem constant byte address 0x4 - core index']
  #allocation1 [shape = 'u32[144,128]{1,0:T(1,128)}', space=vmem, size = 0x12000, scoped, tag = 'internal scratch']
  %s0 = inlined_call_operand.vmem [shape: f32[256,11], index: 0, kind: input, shape index: {}]
  %s1 = inlined_call_operand.vmem [shape: bf16[11,32], index: 1, kind: input, shape index: {}]
  %s2 = inlined_call_operand.vmem [shape: f32[1,32], index: 2, kind: input, shape index: {}]
  %s3 = inlined_call_operand.vmem [shape: bf16[1,32,32], index: 3, kind: input, shape index: {}]
  %s4 = inlined_call_operand.vmem [shape: f32[1,1,32], index: 4, kind: input, shape index: {}]
  %s5 = inlined_call_operand.vmem [shape: bf16[1,32,32], index: 5, kind: input, shape index: {}]
  %s6 = inlined_call_operand.vmem [shape: f32[1,1,32], index: 6, kind: input, shape index: {}]
  %s7 = inlined_call_operand.vmem [shape: f32[32,16], index: 7, kind: output, shape index: {}]
  %s8 = sld [smem:[#allocation0]]
  $region38: #{tpu_custom_call.1} parent=0
    _
  %s10 = ssub.s32 1, %s8
  %s11 = scalar_select 0, %s10, %s8
  // Predicated region
  $region2: #{tpu_custom_call.1} parent=0 // pred_check
    _
  $region3: #{tpu_custom_call.1} parent=0 // pred_check_branch
    %13 = sbr.rel (0) target = $region5
  $region4: #{tpu_custom_call.1} parent=0 // pred_region
    _
  $region5: #{tpu_custom_call.1} parent=0 // pred_fallthru
    _
  // Predicated region
  $region6: #{tpu_custom_call.1} parent=0 // pred_check
    _
  $region7: #{tpu_custom_call.1} parent=0 // pred_check_branch
    %15 = sbr.rel (0) target = $region9
  $region8: #{tpu_custom_call.1} parent=0 // pred_region
    _
  $region9: #{tpu_custom_call.1} parent=0 // pred_fallthru
    _
  // Predicated region
  $region10: #{tpu_custom_call.1} parent=0 // pred_check
    _
  $region11: #{tpu_custom_call.1} parent=0 // pred_check_branch
    %17 = sbr.rel (0) target = $region13
  $region12: #{tpu_custom_call.1} parent=0 // pred_region
    _
  $region13: #{tpu_custom_call.1} parent=0 // pred_fallthru
    _
  // Predicated region
  $region14: #{tpu_custom_call.1} parent=0 // pred_check
    _
  $region15: #{tpu_custom_call.1} parent=0 // pred_check_branch
    %19 = sbr.rel (0) target = $region17
  $region16: #{tpu_custom_call.1} parent=0 // pred_region
    _
  $region17: #{tpu_custom_call.1} parent=0 // pred_fallthru
    _
  // Predicated region
  $region18: #{tpu_custom_call.1} parent=0 // pred_check
    _
  $region19: #{tpu_custom_call.1} parent=0 // pred_check_branch
    %21 = sbr.rel (0) target = $region21
  $region20: #{tpu_custom_call.1} parent=0 // pred_region
    _
  $region21: #{tpu_custom_call.1} parent=0 // pred_fallthru
    _
  // Predicated region
  $region22: #{tpu_custom_call.1} parent=0 // pred_check
    _
  $region23: #{tpu_custom_call.1} parent=0 // pred_check_branch
    %23 = sbr.rel (0) target = $region25
  $region24: #{tpu_custom_call.1} parent=0 // pred_region
    _
  $region25: #{tpu_custom_call.1} parent=0 // pred_fallthru
    _
  // Predicated region
  $region26: #{tpu_custom_call.1} parent=0 // pred_check
    _
  $region27: #{tpu_custom_call.1} parent=0 // pred_check_branch
    %25 = sbr.rel (0) target = $region29
  $region28: #{tpu_custom_call.1} parent=0 // pred_region
    _
  $region29: #{tpu_custom_call.1} parent=0 // pred_fallthru
    _
  %v27 = vld [vmem:[%s0] sm:$0xff]
  %v28 = vld [vmem:[%s0 + $0x8] sm:$0xff]
  %v29 = vld [vmem:[%s0 + $0x10] sm:$0xff]
  %v30 = vld [vmem:[%s0 + $0x18] sm:$0xff]
  %v31 = vld [vmem:[%s0 + $0x20] sm:$0xff]
  %v32 = vld [vmem:[%s0 + $0x28] sm:$0xff]
  %v33 = vld [vmem:[%s0 + $0x30] sm:$0xff]
  %v34 = vld [vmem:[%s0 + $0x38] sm:$0xff]
  %v35 = vld [vmem:[%s0 + $0x40] sm:$0xff]
  %v36 = vld [vmem:[%s0 + $0x48] sm:$0xff]
  %v37 = vld [vmem:[%s0 + $0x50] sm:$0xff]
  %v38 = vld [vmem:[%s0 + $0x58] sm:$0xff]
  %v39 = vld [vmem:[%s0 + $0x60] sm:$0xff]
  %v40 = vld [vmem:[%s0 + $0x68] sm:$0xff]
  %v41 = vld [vmem:[%s0 + $0x70] sm:$0xff]
  %v42 = vld [vmem:[%s0 + $0x78] sm:$0xff]
  %v43 = vld [vmem:[%s0 + $0x80] sm:$0xff]
  %v44 = vld [vmem:[%s0 + $0x88] sm:$0xff]
  %v45 = vld [vmem:[%s0 + $0x90] sm:$0xff]
  %v46 = vld [vmem:[%s0 + $0x98] sm:$0xff]
  %v47 = vld [vmem:[%s0 + $0xa0] sm:$0xff]
  %v48 = vld [vmem:[%s0 + $0xa8] sm:$0xff]
  %v49 = vld [vmem:[%s0 + $0xb0] sm:$0xff]
  %v50 = vld [vmem:[%s0 + $0xb8] sm:$0xff]
  %v51 = vld [vmem:[%s0 + $0xc0] sm:$0xff]
  %v52 = vld [vmem:[%s0 + $0xc8] sm:$0xff]
  %v53 = vld [vmem:[%s0 + $0xd0] sm:$0xff]
  %v54 = vld [vmem:[%s0 + $0xd8] sm:$0xff]
  %v55 = vld [vmem:[%s0 + $0xe0] sm:$0xff]
  %v56 = vld [vmem:[%s0 + $0xe8] sm:$0xff]
  %v57 = vld [vmem:[%s0 + $0xf0] sm:$0xff]
  %v58 = vld [vmem:[%s0 + $0xf8] sm:$0xff]
  %v59 = vpack.c.bf16 %v28, %v27
  %v60 = vpack.c.bf16 %v30, %v29
  %v61 = vpack.c.bf16 %v32, %v31
  %v62 = vpack.c.bf16 %v34, %v33
  %v63 = vpack.c.bf16 %v36, %v35
  %v64 = vpack.c.bf16 %v38, %v37
  %v65 = vpack.c.bf16 %v40, %v39
  %v66 = vpack.c.bf16 %v42, %v41
  %v67 = vpack.c.bf16 %v44, %v43
  %v68 = vpack.c.bf16 %v46, %v45
  %v69 = vpack.c.bf16 %v48, %v47
  %v70 = vpack.c.bf16 %v50, %v49
  %v71 = vpack.c.bf16 %v52, %v51
  %v72 = vpack.c.bf16 %v54, %v53
  %v73 = vpack.c.bf16 %v56, %v55
  %v74 = vpack.c.bf16 %v58, %v57
  %v75 = vld [vmem:[%s1] sm:$0xf]
  %v76 = vld [vmem:[%s1 + $0x4] sm:$0x3]
  %v77 = vld [vmem:[%s2] sm:$0x1]
  %v79 = vlaneseq
  %v80 = vshrl.u32 %v79, 7
  %v81 = vsub.s32 0, %v80
  %v82 = vrot.slane %v77, %v81
  %v86 = vunpack.c.l.b16 %v75
  %v87 = vunpack.c.l.b16 %v76
  %v88 = vpack.c.b16 %v87, %v86
  %vm89 = vcmask 89088
  %v91 = vsel %vm89, %v59, 0
  %v94 = vsel %vm89, %v60, 0
  %v97 = vsel %vm89, %v61, 0
  %v100 = vsel %vm89, %v62, 0
  %v103 = vsel %vm89, %v63, 0
  %v106 = vsel %vm89, %v64, 0
  %v109 = vsel %vm89, %v65, 0
  %v112 = vsel %vm89, %v66, 0
  %v115 = vsel %vm89, %v67, 0
  %v118 = vsel %vm89, %v68, 0
  %v121 = vsel %vm89, %v69, 0
  %v124 = vsel %vm89, %v70, 0
  %v127 = vsel %vm89, %v71, 0
  %v130 = vsel %vm89, %v72, 0
  %v133 = vsel %vm89, %v73, 0
  %v136 = vsel %vm89, %v74, 0
  %vm138 = vcmask 1044480
  %vm139 = vcmask 1045504
  %v140 = vsel %vm138, 4294967295, 65535
  %v141 = vsel %vm139, %v140, 0
  %v143 = vand.u32 %v88, %v141
  %145 = vmatprep.subr.bf16.mxu0 0
  %146 = vmatpush1.bf16.msra.mxu0 %v143
  %147 = vmatprep.subr.bf16.mxu0 0
  %148 = vmatpush1.bf16.msra.mxu0 0
  %149 = vmatprep.subr.bf16.mxu0 0
  %150 = vmatpush1.bf16.msra.mxu0 0
  %151 = vmatprep.subr.bf16.mxu0 0
  %152 = vmatpush1.bf16.msra.mxu0 0
  %153 = vmatprep.subr.bf16.mxu0 0
  %154 = vmatpush1.bf16.msra.mxu0 0
  %155 = vmatprep.subr.bf16.mxu0 0
  %156 = vmatpush1.bf16.msra.mxu0 0
  %157 = vmatprep.subr.bf16.mxu0 0
  %158 = vmatpush1.bf16.msra.mxu0 0
  %159 = vmatprep.subr.bf16.mxu0 0
  %160 = vmatpush1.bf16.msra.mxu0 0
  %161 = vmatprep.subr.bf16.mxu0 0
  %162 = vmatpush1.bf16.msra.mxu0 0
  %163 = vmatprep.subr.bf16.mxu0 0
  %164 = vmatpush1.bf16.msra.mxu0 0
  %165 = vmatprep.subr.bf16.mxu0 0
  %166 = vmatpush1.bf16.msra.mxu0 0
  %167 = vmatprep.subr.bf16.mxu0 0
  %168 = vmatpush1.bf16.msra.mxu0 0
  %169 = vmatprep.subr.bf16.mxu0 0
  %170 = vmatpush1.bf16.msra.mxu0 0
  %171 = vmatprep.subr.bf16.mxu0 0
  %172 = vmatpush1.bf16.msra.mxu0 0
  %173 = vmatprep.subr.bf16.mxu0 0
  %174 = vmatpush1.bf16.msra.mxu0 0
  %175 = vmatprep.subr.bf16.mxu0 0
  %176 = vmatpush1.bf16.msra.mxu0 0
  %177 = vmatprep.mubr.bf16.mxu0 0
  %178 = vmatmul.mubr.bf16.gmra.mrb[0].mxu0 %v91
  %v179 = vpop.f32.mrb[0].mxu0
  %v180 = vadd.f32 %v82, %v179
  %v181 = vpop.f32.mrb[0].mxu0
  %v182 = vpop.f32.mrb[0].mxu0
  %v183 = vadd.f32 %v82, %v182
  %v184 = vpop.f32.mrb[0].mxu0
  %185 = vmatprep.mubr.bf16.mxu0 0
  %186 = vmatmul.mubr.bf16.gmra.mrb[0].mxu0 %v94
  %v187 = vpop.f32.mrb[0].mxu0
  %v188 = vadd.f32 %v82, %v187
  %v189 = vpop.f32.mrb[0].mxu0
  %v190 = vpop.f32.mrb[0].mxu0
  %v191 = vadd.f32 %v82, %v190
  %v192 = vpop.f32.mrb[0].mxu0
  %193 = vmatprep.mubr.bf16.mxu0 0
  %194 = vmatmul.mubr.bf16.gmra.mrb[0].mxu0 %v97
  %v195 = vpop.f32.mrb[0].mxu0
  %v196 = vadd.f32 %v82, %v195
  %v197 = vpop.f32.mrb[0].mxu0
  %v198 = vpop.f32.mrb[0].mxu0
  %v199 = vadd.f32 %v82, %v198
  %v200 = vpop.f32.mrb[0].mxu0
  %201 = vmatprep.mubr.bf16.mxu0 0
  %202 = vmatmul.mubr.bf16.gmra.mrb[0].mxu0 %v100
  %v203 = vpop.f32.mrb[0].mxu0
  %v204 = vadd.f32 %v82, %v203
  %v205 = vpop.f32.mrb[0].mxu0
  %v206 = vpop.f32.mrb[0].mxu0
  %v207 = vadd.f32 %v82, %v206
  %v208 = vpop.f32.mrb[0].mxu0
  %209 = vmatprep.mubr.bf16.mxu0 0
  %210 = vmatmul.mubr.bf16.gmra.mrb[0].mxu0 %v103
  %v211 = vpop.f32.mrb[0].mxu0
  %v212 = vadd.f32 %v82, %v211
  %v213 = vpop.f32.mrb[0].mxu0
  %v214 = vpop.f32.mrb[0].mxu0
  %v215 = vadd.f32 %v82, %v214
  %v216 = vpop.f32.mrb[0].mxu0
  %217 = vmatprep.mubr.bf16.mxu0 0
  %218 = vmatmul.mubr.bf16.gmra.mrb[0].mxu0 %v106
  %v219 = vpop.f32.mrb[0].mxu0
  %v220 = vadd.f32 %v82, %v219
  %v221 = vpop.f32.mrb[0].mxu0
  %v222 = vpop.f32.mrb[0].mxu0
  %v223 = vadd.f32 %v82, %v222
  %v224 = vpop.f32.mrb[0].mxu0
  %225 = vmatprep.mubr.bf16.mxu0 0
  %226 = vmatmul.mubr.bf16.gmra.mrb[0].mxu0 %v109
  %v227 = vpop.f32.mrb[0].mxu0
  %v228 = vadd.f32 %v82, %v227
  %v229 = vpop.f32.mrb[0].mxu0
  %v230 = vpop.f32.mrb[0].mxu0
  %v231 = vadd.f32 %v82, %v230
  %v232 = vpop.f32.mrb[0].mxu0
  %233 = vmatprep.mubr.bf16.mxu0 0
  %234 = vmatmul.mubr.bf16.gmra.mrb[0].mxu0 %v112
  %v235 = vpop.f32.mrb[0].mxu0
  %v236 = vadd.f32 %v82, %v235
  %v237 = vpop.f32.mrb[0].mxu0
  %v238 = vpop.f32.mrb[0].mxu0
  %v239 = vadd.f32 %v82, %v238
  %v240 = vpop.f32.mrb[0].mxu0
  %241 = vmatprep.mubr.bf16.mxu0 0
  %242 = vmatmul.mubr.bf16.gmra.mrb[0].mxu0 %v115
  %v243 = vpop.f32.mrb[0].mxu0
  %v244 = vadd.f32 %v82, %v243
  %v245 = vpop.f32.mrb[0].mxu0
  %v246 = vpop.f32.mrb[0].mxu0
  %v247 = vadd.f32 %v82, %v246
  %v248 = vpop.f32.mrb[0].mxu0
  %249 = vmatprep.mubr.bf16.mxu0 0
  %250 = vmatmul.mubr.bf16.gmra.mrb[0].mxu0 %v118
  %v251 = vpop.f32.mrb[0].mxu0
  %v252 = vadd.f32 %v82, %v251
  %v253 = vpop.f32.mrb[0].mxu0
  %v254 = vpop.f32.mrb[0].mxu0
  %v255 = vadd.f32 %v82, %v254
  %v256 = vpop.f32.mrb[0].mxu0
  %257 = vmatprep.mubr.bf16.mxu0 0
  %258 = vmatmul.mubr.bf16.gmra.mrb[0].mxu0 %v121
  %v259 = vpop.f32.mrb[0].mxu0
  %v260 = vadd.f32 %v82, %v259
  %v261 = vpop.f32.mrb[0].mxu0
  %v262 = vpop.f32.mrb[0].mxu0
  %v263 = vadd.f32 %v82, %v262
  %v264 = vpop.f32.mrb[0].mxu0
  %265 = vmatprep.mubr.bf16.mxu0 0
  %266 = vmatmul.mubr.bf16.gmra.mrb[0].mxu0 %v124
  %v267 = vpop.f32.mrb[0].mxu0
  %v268 = vadd.f32 %v82, %v267
  %v269 = vpop.f32.mrb[0].mxu0
  %v270 = vpop.f32.mrb[0].mxu0
  %v271 = vadd.f32 %v82, %v270
  %v272 = vpop.f32.mrb[0].mxu0
  %273 = vmatprep.mubr.bf16.mxu0 0
  %274 = vmatmul.mubr.bf16.gmra.mrb[0].mxu0 %v127
  %v275 = vpop.f32.mrb[0].mxu0
  %v276 = vadd.f32 %v82, %v275
  %v277 = vpop.f32.mrb[0].mxu0
  %v278 = vpop.f32.mrb[0].mxu0
  %v279 = vadd.f32 %v82, %v278
  %v280 = vpop.f32.mrb[0].mxu0
  %281 = vmatprep.mubr.bf16.mxu0 0
  %282 = vmatmul.mubr.bf16.gmra.mrb[0].mxu0 %v130
  %v283 = vpop.f32.mrb[0].mxu0
  %v284 = vadd.f32 %v82, %v283
  %v285 = vpop.f32.mrb[0].mxu0
  %v286 = vpop.f32.mrb[0].mxu0
  %v287 = vadd.f32 %v82, %v286
  %v288 = vpop.f32.mrb[0].mxu0
  %289 = vmatprep.mubr.bf16.mxu0 0
  %290 = vmatmul.mubr.bf16.gmra.mrb[0].mxu0 %v133
  %v291 = vpop.f32.mrb[0].mxu0
  %v292 = vadd.f32 %v82, %v291
  %v293 = vpop.f32.mrb[0].mxu0
  %v294 = vpop.f32.mrb[0].mxu0
  %v295 = vadd.f32 %v82, %v294
  %v296 = vpop.f32.mrb[0].mxu0
  %297 = vmatprep.mubr.bf16.mxu0 0
  %298 = vmatmul.mubr.bf16.gmra.mrb[0].mxu0 %v136
  %v299 = vpop.f32.mrb[0].mxu0
  %v300 = vadd.f32 %v82, %v299
  %v301 = vpop.f32.mrb[0].mxu0
  %v302 = vpop.f32.mrb[0].mxu0
  %v303 = vadd.f32 %v82, %v302
  %v304 = vpop.f32.mrb[0].mxu0
  %305 = vdwg.mxu0
  %v306 = vmax.f32 %v180, 0.0
  %v307 = vmax.f32 %v183, 0.0
  %v308 = vmax.f32 %v188, 0.0
  %v309 = vmax.f32 %v191, 0.0
  %v310 = vmax.f32 %v196, 0.0
  %v311 = vmax.f32 %v199, 0.0
  %v312 = vmax.f32 %v204, 0.0
  %v313 = vmax.f32 %v207, 0.0
  %v314 = vmax.f32 %v212, 0.0
  %v315 = vmax.f32 %v215, 0.0
  %v316 = vmax.f32 %v220, 0.0
  %v317 = vmax.f32 %v223, 0.0
  %v318 = vmax.f32 %v228, 0.0
  %v319 = vmax.f32 %v231, 0.0
  %v320 = vmax.f32 %v236, 0.0
  %v321 = vmax.f32 %v239, 0.0
  %v322 = vmax.f32 %v244, 0.0
  %v323 = vmax.f32 %v247, 0.0
  %v324 = vmax.f32 %v252, 0.0
  %v325 = vmax.f32 %v255, 0.0
  %v326 = vmax.f32 %v260, 0.0
  %v327 = vmax.f32 %v263, 0.0
  %v328 = vmax.f32 %v268, 0.0
  %v329 = vmax.f32 %v271, 0.0
  %v330 = vmax.f32 %v276, 0.0
  %v331 = vmax.f32 %v279, 0.0
  %v332 = vmax.f32 %v284, 0.0
  %v333 = vmax.f32 %v287, 0.0
  %v334 = vmax.f32 %v292, 0.0
  %v335 = vmax.f32 %v295, 0.0
  %v336 = vmax.f32 %v300, 0.0
  %v337 = vmax.f32 %v303, 0.0
  %v338 = vpack.c.bf16 %v307, %v306
  %v339 = vpack.c.bf16 %v309, %v308
  %v340 = vpack.c.bf16 %v311, %v310
  %v341 = vpack.c.bf16 %v313, %v312
  %v342 = vpack.c.bf16 %v315, %v314
  %v343 = vpack.c.bf16 %v317, %v316
  %v344 = vpack.c.bf16 %v319, %v318
  %v345 = vpack.c.bf16 %v321, %v320
  %v346 = vpack.c.bf16 %v323, %v322
  %v347 = vpack.c.bf16 %v325, %v324
  %v348 = vpack.c.bf16 %v327, %v326
  %v349 = vpack.c.bf16 %v329, %v328
  %v350 = vpack.c.bf16 %v331, %v330
  %v351 = vpack.c.bf16 %v333, %v332
  %v352 = vpack.c.bf16 %v335, %v334
  %v353 = vpack.c.bf16 %v337, %v336
  %v354 = vld [vmem:[%s3] sm:$0xf]
  %v355 = vld [vmem:[%s3 + $0x4] sm:$0xf]
  %v356 = vld [vmem:[%s3 + $0x8] sm:$0xf]
  %v357 = vld [vmem:[%s3 + $0xc] sm:$0xf]
  %v358 = vld [vmem:[%s4] sm:$0x1]
  %v360 = vlaneseq
  %v361 = vshrl.u32 %v360, 7
  %v362 = vsub.s32 0, %v361
  %v363 = vrot.slane %v358, %v362
  %v369 = vunpack.c.l.b16 %v354
  %v370 = vunpack.c.l.b16 %v355
  %v371 = vunpack.c.l.b16 %v356
  %v372 = vunpack.c.l.b16 %v357
  %v373 = vpack.c.b16 %v370, %v369
  %v374 = vpack.c.b16 %v372, %v371
  %vm377 = vcmask 261120
  %v379 = vsel %vm377, %v338, 0
  %v382 = vsel %vm377, %v339, 0
  %v385 = vsel %vm377, %v340, 0
  %v388 = vsel %vm377, %v341, 0
  %v391 = vsel %vm377, %v342, 0
  %v394 = vsel %vm377, %v343, 0
  %v397 = vsel %vm377, %v344, 0
  %v400 = vsel %vm377, %v345, 0
  %v403 = vsel %vm377, %v346, 0
  %v406 = vsel %vm377, %v347, 0
  %v409 = vsel %vm377, %v348, 0
  %v412 = vsel %vm377, %v349, 0
  %v415 = vsel %vm377, %v350, 0
  %v418 = vsel %vm377, %v351, 0
  %v421 = vsel %vm377, %v352, 0
  %v424 = vsel %vm377, %v353, 0
  %426 = vmatprep.subr.bf16.mxu0 0
  %427 = vmatpush1.bf16.msra.mxu0 %v373
  %428 = vmatprep.subr.bf16.mxu0 0
  %429 = vmatpush1.bf16.msra.mxu0 %v374
  %430 = vmatprep.subr.bf16.mxu0 0
  %431 = vmatpush1.bf16.msra.mxu0 0
  %432 = vmatprep.subr.bf16.mxu0 0
  %433 = vmatpush1.bf16.msra.mxu0 0
  %434 = vmatprep.subr.bf16.mxu0 0
  %435 = vmatpush1.bf16.msra.mxu0 0
  %436 = vmatprep.subr.bf16.mxu0 0
  %437 = vmatpush1.bf16.msra.mxu0 0
  %438 = vmatprep.subr.bf16.mxu0 0
  %439 = vmatpush1.bf16.msra.mxu0 0
  %440 = vmatprep.subr.bf16.mxu0 0
  %441 = vmatpush1.bf16.msra.mxu0 0
  %442 = vmatprep.subr.bf16.mxu0 0
  %443 = vmatpush1.bf16.msra.mxu0 0
  %444 = vmatprep.subr.bf16.mxu0 0
  %445 = vmatpush1.bf16.msra.mxu0 0
  %446 = vmatprep.subr.bf16.mxu0 0
  %447 = vmatpush1.bf16.msra.mxu0 0
  %448 = vmatprep.subr.bf16.mxu0 0
  %449 = vmatpush1.bf16.msra.mxu0 0
  %450 = vmatprep.subr.bf16.mxu0 0
  %451 = vmatpush1.bf16.msra.mxu0 0
  %452 = vmatprep.subr.bf16.mxu0 0
  %453 = vmatpush1.bf16.msra.mxu0 0
  %454 = vmatprep.subr.bf16.mxu0 0
  %455 = vmatpush1.bf16.msra.mxu0 0
  %456 = vmatprep.subr.bf16.mxu0 0
  %457 = vmatpush1.bf16.msra.mxu0 0
  %458 = vmatprep.mubr.bf16.mxu0 0
  %459 = vmatmul.mubr.bf16.gmra.mrb[0].mxu0 %v379
  %v460 = vpop.f32.mrb[0].mxu0
  %v461 = vadd.f32 %v363, %v460
  %v462 = vpop.f32.mrb[0].mxu0
  %v463 = vpop.f32.mrb[0].mxu0
  %v464 = vadd.f32 %v363, %v463
  %v465 = vpop.f32.mrb[0].mxu0
  %466 = vmatprep.mubr.bf16.mxu0 0
  %467 = vmatmul.mubr.bf16.gmra.mrb[0].mxu0 %v382
  %v468 = vpop.f32.mrb[0].mxu0
  %v469 = vadd.f32 %v363, %v468
  %v470 = vpop.f32.mrb[0].mxu0
  %v471 = vpop.f32.mrb[0].mxu0
  %v472 = vadd.f32 %v363, %v471
  %v473 = vpop.f32.mrb[0].mxu0
  %474 = vmatprep.mubr.bf16.mxu0 0
  %475 = vmatmul.mubr.bf16.gmra.mrb[0].mxu0 %v385
  %v476 = vpop.f32.mrb[0].mxu0
  %v477 = vadd.f32 %v363, %v476
  %v478 = vpop.f32.mrb[0].mxu0
  %v479 = vpop.f32.mrb[0].mxu0
  %v480 = vadd.f32 %v363, %v479
  %v481 = vpop.f32.mrb[0].mxu0
  %482 = vmatprep.mubr.bf16.mxu0 0
  %483 = vmatmul.mubr.bf16.gmra.mrb[0].mxu0 %v388
  %v484 = vpop.f32.mrb[0].mxu0
  %v485 = vadd.f32 %v363, %v484
  %v486 = vpop.f32.mrb[0].mxu0
  %v487 = vpop.f32.mrb[0].mxu0
  %v488 = vadd.f32 %v363, %v487
  %v489 = vpop.f32.mrb[0].mxu0
  %490 = vmatprep.mubr.bf16.mxu0 0
  %491 = vmatmul.mubr.bf16.gmra.mrb[0].mxu0 %v391
  %v492 = vpop.f32.mrb[0].mxu0
  %v493 = vadd.f32 %v363, %v492
  %v494 = vpop.f32.mrb[0].mxu0
  %v495 = vpop.f32.mrb[0].mxu0
  %v496 = vadd.f32 %v363, %v495
  %v497 = vpop.f32.mrb[0].mxu0
  %498 = vmatprep.mubr.bf16.mxu0 0
  %499 = vmatmul.mubr.bf16.gmra.mrb[0].mxu0 %v394
  %v500 = vpop.f32.mrb[0].mxu0
  %v501 = vadd.f32 %v363, %v500
  %v502 = vpop.f32.mrb[0].mxu0
  %v503 = vpop.f32.mrb[0].mxu0
  %v504 = vadd.f32 %v363, %v503
  %v505 = vpop.f32.mrb[0].mxu0
  %506 = vmatprep.mubr.bf16.mxu0 0
  %507 = vmatmul.mubr.bf16.gmra.mrb[0].mxu0 %v397
  %v508 = vpop.f32.mrb[0].mxu0
  %v509 = vadd.f32 %v363, %v508
  %v510 = vpop.f32.mrb[0].mxu0
  %v511 = vpop.f32.mrb[0].mxu0
  %v512 = vadd.f32 %v363, %v511
  %v513 = vpop.f32.mrb[0].mxu0
  %514 = vmatprep.mubr.bf16.mxu0 0
  %515 = vmatmul.mubr.bf16.gmra.mrb[0].mxu0 %v400
  %v516 = vpop.f32.mrb[0].mxu0
  %v517 = vadd.f32 %v363, %v516
  %v518 = vpop.f32.mrb[0].mxu0
  %v519 = vpop.f32.mrb[0].mxu0
  %v520 = vadd.f32 %v363, %v519
  %v521 = vpop.f32.mrb[0].mxu0
  %522 = vmatprep.mubr.bf16.mxu0 0
  %523 = vmatmul.mubr.bf16.gmra.mrb[0].mxu0 %v403
  %v524 = vpop.f32.mrb[0].mxu0
  %v525 = vadd.f32 %v363, %v524
  %v526 = vpop.f32.mrb[0].mxu0
  %v527 = vpop.f32.mrb[0].mxu0
  %v528 = vadd.f32 %v363, %v527
  %v529 = vpop.f32.mrb[0].mxu0
  %530 = vmatprep.mubr.bf16.mxu0 0
  %531 = vmatmul.mubr.bf16.gmra.mrb[0].mxu0 %v406
  %v532 = vpop.f32.mrb[0].mxu0
  %v533 = vadd.f32 %v363, %v532
  %v534 = vpop.f32.mrb[0].mxu0
  %v535 = vpop.f32.mrb[0].mxu0
  %v536 = vadd.f32 %v363, %v535
  %v537 = vpop.f32.mrb[0].mxu0
  %538 = vmatprep.mubr.bf16.mxu0 0
  %539 = vmatmul.mubr.bf16.gmra.mrb[0].mxu0 %v409
  %v540 = vpop.f32.mrb[0].mxu0
  %v541 = vadd.f32 %v363, %v540
  %v542 = vpop.f32.mrb[0].mxu0
  %v543 = vpop.f32.mrb[0].mxu0
  %v544 = vadd.f32 %v363, %v543
  %v545 = vpop.f32.mrb[0].mxu0
  %546 = vmatprep.mubr.bf16.mxu0 0
  %547 = vmatmul.mubr.bf16.gmra.mrb[0].mxu0 %v412
  %v548 = vpop.f32.mrb[0].mxu0
  %v549 = vadd.f32 %v363, %v548
  %v550 = vpop.f32.mrb[0].mxu0
  %v551 = vpop.f32.mrb[0].mxu0
  %v552 = vadd.f32 %v363, %v551
  %v553 = vpop.f32.mrb[0].mxu0
  %554 = vmatprep.mubr.bf16.mxu0 0
  %555 = vmatmul.mubr.bf16.gmra.mrb[0].mxu0 %v415
  %v556 = vpop.f32.mrb[0].mxu0
  %v557 = vadd.f32 %v363, %v556
  %v558 = vpop.f32.mrb[0].mxu0
  %v559 = vpop.f32.mrb[0].mxu0
  %v560 = vadd.f32 %v363, %v559
  %v561 = vpop.f32.mrb[0].mxu0
  %562 = vmatprep.mubr.bf16.mxu0 0
  %563 = vmatmul.mubr.bf16.gmra.mrb[0].mxu0 %v418
  %v564 = vpop.f32.mrb[0].mxu0
  %v565 = vadd.f32 %v363, %v564
  %v566 = vpop.f32.mrb[0].mxu0
  %v567 = vpop.f32.mrb[0].mxu0
  %v568 = vadd.f32 %v363, %v567
  %v569 = vpop.f32.mrb[0].mxu0
  %570 = vmatprep.mubr.bf16.mxu0 0
  %571 = vmatmul.mubr.bf16.gmra.mrb[0].mxu0 %v421
  %v572 = vpop.f32.mrb[0].mxu0
  %v573 = vadd.f32 %v363, %v572
  %v574 = vpop.f32.mrb[0].mxu0
  %v575 = vpop.f32.mrb[0].mxu0
  %v576 = vadd.f32 %v363, %v575
  %v577 = vpop.f32.mrb[0].mxu0
  %578 = vmatprep.mubr.bf16.mxu0 0
  %579 = vmatmul.mubr.bf16.gmra.mrb[0].mxu0 %v424
  %v580 = vpop.f32.mrb[0].mxu0
  %v581 = vadd.f32 %v363, %v580
  %v582 = vpop.f32.mrb[0].mxu0
  %v583 = vpop.f32.mrb[0].mxu0
  %v584 = vadd.f32 %v363, %v583
  %v585 = vpop.f32.mrb[0].mxu0
  %586 = vdwg.mxu0
  %v587 = vmax.f32 %v461, 0.0
  %v588 = vmax.f32 %v464, 0.0
  %v589 = vmax.f32 %v469, 0.0
  %v590 = vmax.f32 %v472, 0.0
  %v591 = vmax.f32 %v477, 0.0
  %v592 = vmax.f32 %v480, 0.0
  %v593 = vmax.f32 %v485, 0.0
  %v594 = vmax.f32 %v488, 0.0
  %v595 = vmax.f32 %v493, 0.0
  %v596 = vmax.f32 %v496, 0.0
  %v597 = vmax.f32 %v501, 0.0
  %v598 = vmax.f32 %v504, 0.0
  %v599 = vmax.f32 %v509, 0.0
  %v600 = vmax.f32 %v512, 0.0
  %v601 = vmax.f32 %v517, 0.0
  %v602 = vmax.f32 %v520, 0.0
  %v603 = vmax.f32 %v525, 0.0
  %v604 = vmax.f32 %v528, 0.0
  %v605 = vmax.f32 %v533, 0.0
  %v606 = vmax.f32 %v536, 0.0
  %v607 = vmax.f32 %v541, 0.0
  %v608 = vmax.f32 %v544, 0.0
  %v609 = vmax.f32 %v549, 0.0
  %v610 = vmax.f32 %v552, 0.0
  %v611 = vmax.f32 %v557, 0.0
  %v612 = vmax.f32 %v560, 0.0
  %v613 = vmax.f32 %v565, 0.0
  %v614 = vmax.f32 %v568, 0.0
  %v615 = vmax.f32 %v573, 0.0
  %v616 = vmax.f32 %v576, 0.0
  %v617 = vmax.f32 %v581, 0.0
  %v618 = vmax.f32 %v584, 0.0
  %v619 = vpack.c.bf16 %v588, %v587
  %v620 = vpack.c.bf16 %v590, %v589
  %v621 = vpack.c.bf16 %v592, %v591
  %v622 = vpack.c.bf16 %v594, %v593
  %v623 = vpack.c.bf16 %v596, %v595
  %v624 = vpack.c.bf16 %v598, %v597
  %v625 = vpack.c.bf16 %v600, %v599
  %v626 = vpack.c.bf16 %v602, %v601
  %v627 = vpack.c.bf16 %v604, %v603
  %v628 = vpack.c.bf16 %v606, %v605
  %v629 = vpack.c.bf16 %v608, %v607
  %v630 = vpack.c.bf16 %v610, %v609
  %v631 = vpack.c.bf16 %v612, %v611
  %v632 = vpack.c.bf16 %v614, %v613
  %v633 = vpack.c.bf16 %v616, %v615
  %v634 = vpack.c.bf16 %v618, %v617
  %v635 = vld [vmem:[%s5] sm:$0xf]
  %v636 = vld [vmem:[%s5 + $0x4] sm:$0xf]
  %v637 = vld [vmem:[%s5 + $0x8] sm:$0xf]
  %v638 = vld [vmem:[%s5 + $0xc] sm:$0xf]
  %v639 = vld [vmem:[%s6] sm:$0x1]
  %v641 = vlaneseq
  %v642 = vshrl.u32 %v641, 7
  %v643 = vsub.s32 0, %v642
  %v644 = vrot.slane %v639, %v643
  %v650 = vunpack.c.l.b16 %v635
  %v651 = vunpack.c.l.b16 %v636
  %v652 = vunpack.c.l.b16 %v637
  %v653 = vunpack.c.l.b16 %v638
  %v654 = vpack.c.b16 %v651, %v650
  %v655 = vpack.c.b16 %v653, %v652
  %v659 = vsel %vm377, %v619, 0
  %v662 = vsel %vm377, %v620, 0
  %v665 = vsel %vm377, %v621, 0
  %v668 = vsel %vm377, %v622, 0
  %v671 = vsel %vm377, %v623, 0
  %v674 = vsel %vm377, %v624, 0
  %v677 = vsel %vm377, %v625, 0
  %v680 = vsel %vm377, %v626, 0
  %v683 = vsel %vm377, %v627, 0
  %v686 = vsel %vm377, %v628, 0
  %v689 = vsel %vm377, %v629, 0
  %v692 = vsel %vm377, %v630, 0
  %v695 = vsel %vm377, %v631, 0
  %v698 = vsel %vm377, %v632, 0
  %v701 = vsel %vm377, %v633, 0
  %v704 = vsel %vm377, %v634, 0
  %706 = vmatprep.subr.bf16.mxu0 0
  %707 = vmatpush1.bf16.msra.mxu0 %v654
  %708 = vmatprep.subr.bf16.mxu0 0
  %709 = vmatpush1.bf16.msra.mxu0 %v655
  %710 = vmatprep.subr.bf16.mxu0 0
  %711 = vmatpush1.bf16.msra.mxu0 0
  %712 = vmatprep.subr.bf16.mxu0 0
  %713 = vmatpush1.bf16.msra.mxu0 0
  %714 = vmatprep.subr.bf16.mxu0 0
  %715 = vmatpush1.bf16.msra.mxu0 0
  %716 = vmatprep.subr.bf16.mxu0 0
  %717 = vmatpush1.bf16.msra.mxu0 0
  %718 = vmatprep.subr.bf16.mxu0 0
  %719 = vmatpush1.bf16.msra.mxu0 0
  %720 = vmatprep.subr.bf16.mxu0 0
  %721 = vmatpush1.bf16.msra.mxu0 0
  %722 = vmatprep.subr.bf16.mxu0 0
  %723 = vmatpush1.bf16.msra.mxu0 0
  %724 = vmatprep.subr.bf16.mxu0 0
  %725 = vmatpush1.bf16.msra.mxu0 0
  %726 = vmatprep.subr.bf16.mxu0 0
  %727 = vmatpush1.bf16.msra.mxu0 0
  %728 = vmatprep.subr.bf16.mxu0 0
  %729 = vmatpush1.bf16.msra.mxu0 0
  %730 = vmatprep.subr.bf16.mxu0 0
  %731 = vmatpush1.bf16.msra.mxu0 0
  %732 = vmatprep.subr.bf16.mxu0 0
  %733 = vmatpush1.bf16.msra.mxu0 0
  %734 = vmatprep.subr.bf16.mxu0 0
  %735 = vmatpush1.bf16.msra.mxu0 0
  %736 = vmatprep.subr.bf16.mxu0 0
  %737 = vmatpush1.bf16.msra.mxu0 0
  %738 = vmatprep.mubr.bf16.mxu0 0
  %739 = vmatmul.mubr.bf16.gmra.mrb[0].mxu0 %v659
  %v740 = vpop.f32.mrb[0].mxu0
  %v741 = vadd.f32 %v644, %v740
  %v742 = vpop.f32.mrb[0].mxu0
  %v743 = vpop.f32.mrb[0].mxu0
  %v744 = vadd.f32 %v644, %v743
  %v745 = vpop.f32.mrb[0].mxu0
  %746 = vmatprep.mubr.bf16.mxu0 0
  %747 = vmatmul.mubr.bf16.gmra.mrb[0].mxu0 %v662
  %v748 = vpop.f32.mrb[0].mxu0
  %v749 = vadd.f32 %v644, %v748
  %v750 = vpop.f32.mrb[0].mxu0
  %v751 = vpop.f32.mrb[0].mxu0
  %v752 = vadd.f32 %v644, %v751
  %v753 = vpop.f32.mrb[0].mxu0
  %754 = vmatprep.mubr.bf16.mxu0 0
  %755 = vmatmul.mubr.bf16.gmra.mrb[0].mxu0 %v665
  %v756 = vpop.f32.mrb[0].mxu0
  %v757 = vadd.f32 %v644, %v756
  %v758 = vpop.f32.mrb[0].mxu0
  %v759 = vpop.f32.mrb[0].mxu0
  %v760 = vadd.f32 %v644, %v759
  %v761 = vpop.f32.mrb[0].mxu0
  %762 = vmatprep.mubr.bf16.mxu0 0
  %763 = vmatmul.mubr.bf16.gmra.mrb[0].mxu0 %v668
  %v764 = vpop.f32.mrb[0].mxu0
  %v765 = vadd.f32 %v644, %v764
  %v766 = vpop.f32.mrb[0].mxu0
  %v767 = vpop.f32.mrb[0].mxu0
  %v768 = vadd.f32 %v644, %v767
  %v769 = vpop.f32.mrb[0].mxu0
  %770 = vmatprep.mubr.bf16.mxu0 0
  %771 = vmatmul.mubr.bf16.gmra.mrb[0].mxu0 %v671
  %v772 = vpop.f32.mrb[0].mxu0
  %v773 = vadd.f32 %v644, %v772
  %v774 = vpop.f32.mrb[0].mxu0
  %v775 = vpop.f32.mrb[0].mxu0
  %v776 = vadd.f32 %v644, %v775
  %v777 = vpop.f32.mrb[0].mxu0
  %778 = vmatprep.mubr.bf16.mxu0 0
  %779 = vmatmul.mubr.bf16.gmra.mrb[0].mxu0 %v674
  %v780 = vpop.f32.mrb[0].mxu0
  %v781 = vadd.f32 %v644, %v780
  %v782 = vpop.f32.mrb[0].mxu0
  %v783 = vpop.f32.mrb[0].mxu0
  %v784 = vadd.f32 %v644, %v783
  %v785 = vpop.f32.mrb[0].mxu0
  %786 = vmatprep.mubr.bf16.mxu0 0
  %787 = vmatmul.mubr.bf16.gmra.mrb[0].mxu0 %v677
  %v788 = vpop.f32.mrb[0].mxu0
  %v789 = vadd.f32 %v644, %v788
  %v790 = vpop.f32.mrb[0].mxu0
  %v791 = vpop.f32.mrb[0].mxu0
  %v792 = vadd.f32 %v644, %v791
  %v793 = vpop.f32.mrb[0].mxu0
  %794 = vmatprep.mubr.bf16.mxu0 0
  %795 = vmatmul.mubr.bf16.gmra.mrb[0].mxu0 %v680
  %v796 = vpop.f32.mrb[0].mxu0
  %v797 = vadd.f32 %v644, %v796
  %v798 = vpop.f32.mrb[0].mxu0
  %v799 = vpop.f32.mrb[0].mxu0
  %v800 = vadd.f32 %v644, %v799
  %v801 = vpop.f32.mrb[0].mxu0
  %802 = vmatprep.mubr.bf16.mxu0 0
  %803 = vmatmul.mubr.bf16.gmra.mrb[0].mxu0 %v683
  %v804 = vpop.f32.mrb[0].mxu0
  %v805 = vadd.f32 %v644, %v804
  %v806 = vpop.f32.mrb[0].mxu0
  %v807 = vpop.f32.mrb[0].mxu0
  %v808 = vadd.f32 %v644, %v807
  %v809 = vpop.f32.mrb[0].mxu0
  %810 = vmatprep.mubr.bf16.mxu0 0
  %811 = vmatmul.mubr.bf16.gmra.mrb[0].mxu0 %v686
  %v812 = vpop.f32.mrb[0].mxu0
  %v813 = vadd.f32 %v644, %v812
  %v814 = vpop.f32.mrb[0].mxu0
  %v815 = vpop.f32.mrb[0].mxu0
  %v816 = vadd.f32 %v644, %v815
  %v817 = vpop.f32.mrb[0].mxu0
  %818 = vmatprep.mubr.bf16.mxu0 0
  %819 = vmatmul.mubr.bf16.gmra.mrb[0].mxu0 %v689
  %v820 = vpop.f32.mrb[0].mxu0
  %v821 = vadd.f32 %v644, %v820
  %v822 = vpop.f32.mrb[0].mxu0
  %v823 = vpop.f32.mrb[0].mxu0
  %v824 = vadd.f32 %v644, %v823
  %v825 = vpop.f32.mrb[0].mxu0
  %826 = vmatprep.mubr.bf16.mxu0 0
  %827 = vmatmul.mubr.bf16.gmra.mrb[0].mxu0 %v692
  %v828 = vpop.f32.mrb[0].mxu0
  %v829 = vadd.f32 %v644, %v828
  %v830 = vpop.f32.mrb[0].mxu0
  %v831 = vpop.f32.mrb[0].mxu0
  %v832 = vadd.f32 %v644, %v831
  %v833 = vpop.f32.mrb[0].mxu0
  %834 = vmatprep.mubr.bf16.mxu0 0
  %835 = vmatmul.mubr.bf16.gmra.mrb[0].mxu0 %v695
  %v836 = vpop.f32.mrb[0].mxu0
  %v837 = vadd.f32 %v644, %v836
  %v838 = vpop.f32.mrb[0].mxu0
  %v839 = vpop.f32.mrb[0].mxu0
  %v840 = vadd.f32 %v644, %v839
  %v841 = vpop.f32.mrb[0].mxu0
  %842 = vmatprep.mubr.bf16.mxu0 0
  %843 = vmatmul.mubr.bf16.gmra.mrb[0].mxu0 %v698
  %v844 = vpop.f32.mrb[0].mxu0
  %v845 = vadd.f32 %v644, %v844
  %v846 = vpop.f32.mrb[0].mxu0
  %v847 = vpop.f32.mrb[0].mxu0
  %v848 = vadd.f32 %v644, %v847
  %v849 = vpop.f32.mrb[0].mxu0
  %850 = vmatprep.mubr.bf16.mxu0 0
  %851 = vmatmul.mubr.bf16.gmra.mrb[0].mxu0 %v701
  %v852 = vpop.f32.mrb[0].mxu0
  %v853 = vadd.f32 %v644, %v852
  %v854 = vpop.f32.mrb[0].mxu0
  %v855 = vpop.f32.mrb[0].mxu0
  %v856 = vadd.f32 %v644, %v855
  %v857 = vpop.f32.mrb[0].mxu0
  %858 = vmatprep.mubr.bf16.mxu0 0
  %859 = vmatmul.mubr.bf16.gmra.mrb[0].mxu0 %v704
  %v860 = vpop.f32.mrb[0].mxu0
  %v861 = vadd.f32 %v644, %v860
  %v862 = vpop.f32.mrb[0].mxu0
  %v863 = vpop.f32.mrb[0].mxu0
  %v864 = vadd.f32 %v644, %v863
  %v865 = vpop.f32.mrb[0].mxu0
  %866 = vdwg.mxu0
  %v867 = vadd.f32 %v741, %v306
  %v868 = vadd.f32 %v744, %v307
  %v869 = vadd.f32 %v749, %v308
  %v870 = vadd.f32 %v752, %v309
  %v871 = vadd.f32 %v757, %v310
  %v872 = vadd.f32 %v760, %v311
  %v873 = vadd.f32 %v765, %v312
  %v874 = vadd.f32 %v768, %v313
  %v875 = vadd.f32 %v773, %v314
  %v876 = vadd.f32 %v776, %v315
  %v877 = vadd.f32 %v781, %v316
  %v878 = vadd.f32 %v784, %v317
  %v879 = vadd.f32 %v789, %v318
  %v880 = vadd.f32 %v792, %v319
  %v881 = vadd.f32 %v797, %v320
  %v882 = vadd.f32 %v800, %v321
  %v883 = vadd.f32 %v805, %v322
  %v884 = vadd.f32 %v808, %v323
  %v885 = vadd.f32 %v813, %v324
  %v886 = vadd.f32 %v816, %v325
  %v887 = vadd.f32 %v821, %v326
  %v888 = vadd.f32 %v824, %v327
  %v889 = vadd.f32 %v829, %v328
  %v890 = vadd.f32 %v832, %v329
  %v891 = vadd.f32 %v837, %v330
  %v892 = vadd.f32 %v840, %v331
  %v893 = vadd.f32 %v845, %v332
  %v894 = vadd.f32 %v848, %v333
  %v895 = vadd.f32 %v853, %v334
  %v896 = vadd.f32 %v856, %v335
  %v897 = vadd.f32 %v861, %v336
  %v898 = vadd.f32 %v864, %v337
  %v899 = vmax.f32 %v867, 0.0
  %v900 = vmax.f32 %v868, 0.0
  %v901 = vmax.f32 %v869, 0.0
  %v902 = vmax.f32 %v870, 0.0
  %v903 = vmax.f32 %v871, 0.0
  %v904 = vmax.f32 %v872, 0.0
  %v905 = vmax.f32 %v873, 0.0
  %v906 = vmax.f32 %v874, 0.0
  %v907 = vmax.f32 %v875, 0.0
  %v908 = vmax.f32 %v876, 0.0
  %v909 = vmax.f32 %v877, 0.0
  %v910 = vmax.f32 %v878, 0.0
  %v911 = vmax.f32 %v879, 0.0
  %v912 = vmax.f32 %v880, 0.0
  %v913 = vmax.f32 %v881, 0.0
  %v914 = vmax.f32 %v882, 0.0
  %v915 = vmax.f32 %v883, 0.0
  %v916 = vmax.f32 %v884, 0.0
  %v917 = vmax.f32 %v885, 0.0
  %v918 = vmax.f32 %v886, 0.0
  %v919 = vmax.f32 %v887, 0.0
  %v920 = vmax.f32 %v888, 0.0
  %v921 = vmax.f32 %v889, 0.0
  %v922 = vmax.f32 %v890, 0.0
  %v923 = vmax.f32 %v891, 0.0
  %v924 = vmax.f32 %v892, 0.0
  %v925 = vmax.f32 %v893, 0.0
  %v926 = vmax.f32 %v894, 0.0
  %v927 = vmax.f32 %v895, 0.0
  %v928 = vmax.f32 %v896, 0.0
  %v929 = vmax.f32 %v897, 0.0
  %v930 = vmax.f32 %v898, 0.0
  %v931 = vsel %vm377, %v899, -inf
  %v932 = vsel %vm377, %v900, -inf
  %v933 = vmax.f32 %v931, %v932
  %v934 = vrot.slane %v933, 4
  %v935 = vmax.f32 %v933, %v934
  %v936 = vrot.slane %v935, 2
  %v937 = vmax.f32 %v935, %v936
  %v938 = vrot.slane %v937, 1
  %v939 = vmax.f32 %v937, %v938
  %v940 = vsel %vm377, %v901, -inf
  %v941 = vsel %vm377, %v902, -inf
  %v942 = vmax.f32 %v940, %v941
  %v943 = vrot.slane %v942, 4
  %v944 = vmax.f32 %v942, %v943
  %v945 = vrot.slane %v944, 2
  %v946 = vmax.f32 %v944, %v945
  %v947 = vrot.slane %v946, 1
  %v948 = vmax.f32 %v946, %v947
  %v949 = vsel %vm377, %v903, -inf
  %v950 = vsel %vm377, %v904, -inf
  %v951 = vmax.f32 %v949, %v950
  %v952 = vrot.slane %v951, 4
  %v953 = vmax.f32 %v951, %v952
  %v954 = vrot.slane %v953, 2
  %v955 = vmax.f32 %v953, %v954
  %v956 = vrot.slane %v955, 1
  %v957 = vmax.f32 %v955, %v956
  %v958 = vsel %vm377, %v905, -inf
  %v959 = vsel %vm377, %v906, -inf
  %v960 = vmax.f32 %v958, %v959
  %v961 = vrot.slane %v960, 4
  %v962 = vmax.f32 %v960, %v961
  %v963 = vrot.slane %v962, 2
  %v964 = vmax.f32 %v962, %v963
  %v965 = vrot.slane %v964, 1
  %v966 = vmax.f32 %v964, %v965
  %v967 = vsel %vm377, %v907, -inf
  %v968 = vsel %vm377, %v908, -inf
  %v969 = vmax.f32 %v967, %v968
  %v970 = vrot.slane %v969, 4
  %v971 = vmax.f32 %v969, %v970
  %v972 = vrot.slane %v971, 2
  %v973 = vmax.f32 %v971, %v972
  %v974 = vrot.slane %v973, 1
  %v975 = vmax.f32 %v973, %v974
  %v976 = vsel %vm377, %v909, -inf
  %v977 = vsel %vm377, %v910, -inf
  %v978 = vmax.f32 %v976, %v977
  %v979 = vrot.slane %v978, 4
  %v980 = vmax.f32 %v978, %v979
  %v981 = vrot.slane %v980, 2
  %v982 = vmax.f32 %v980, %v981
  %v983 = vrot.slane %v982, 1
  %v984 = vmax.f32 %v982, %v983
  %v985 = vsel %vm377, %v911, -inf
  %v986 = vsel %vm377, %v912, -inf
  %v987 = vmax.f32 %v985, %v986
  %v988 = vrot.slane %v987, 4
  %v989 = vmax.f32 %v987, %v988
  %v990 = vrot.slane %v989, 2
  %v991 = vmax.f32 %v989, %v990
  %v992 = vrot.slane %v991, 1
  %v993 = vmax.f32 %v991, %v992
  %v994 = vsel %vm377, %v913, -inf
  %v995 = vsel %vm377, %v914, -inf
  %v996 = vmax.f32 %v994, %v995
  %v997 = vrot.slane %v996, 4
  %v998 = vmax.f32 %v996, %v997
  %v999 = vrot.slane %v998, 2
  %v1000 = vmax.f32 %v998, %v999
  %v1001 = vrot.slane %v1000, 1
  %v1002 = vmax.f32 %v1000, %v1001
  %v1003 = vsel %vm377, %v915, -inf
  %v1004 = vsel %vm377, %v916, -inf
  %v1005 = vmax.f32 %v1003, %v1004
  %v1006 = vrot.slane %v1005, 4
  %v1007 = vmax.f32 %v1005, %v1006
  %v1008 = vrot.slane %v1007, 2
  %v1009 = vmax.f32 %v1007, %v1008
  %v1010 = vrot.slane %v1009, 1
  %v1011 = vmax.f32 %v1009, %v1010
  %v1012 = vsel %vm377, %v917, -inf
  %v1013 = vsel %vm377, %v918, -inf
  %v1014 = vmax.f32 %v1012, %v1013
  %v1015 = vrot.slane %v1014, 4
  %v1016 = vmax.f32 %v1014, %v1015
  %v1017 = vrot.slane %v1016, 2
  %v1018 = vmax.f32 %v1016, %v1017
  %v1019 = vrot.slane %v1018, 1
  %v1020 = vmax.f32 %v1018, %v1019
  %v1021 = vsel %vm377, %v919, -inf
  %v1022 = vsel %vm377, %v920, -inf
  %v1023 = vmax.f32 %v1021, %v1022
  %v1024 = vrot.slane %v1023, 4
  %v1025 = vmax.f32 %v1023, %v1024
  %v1026 = vrot.slane %v1025, 2
  %v1027 = vmax.f32 %v1025, %v1026
  %v1028 = vrot.slane %v1027, 1
  %v1029 = vmax.f32 %v1027, %v1028
  %v1030 = vsel %vm377, %v921, -inf
  %v1031 = vsel %vm377, %v922, -inf
  %v1032 = vmax.f32 %v1030, %v1031
  %v1033 = vrot.slane %v1032, 4
  %v1034 = vmax.f32 %v1032, %v1033
  %v1035 = vrot.slane %v1034, 2
  %v1036 = vmax.f32 %v1034, %v1035
  %v1037 = vrot.slane %v1036, 1
  %v1038 = vmax.f32 %v1036, %v1037
  %v1039 = vsel %vm377, %v923, -inf
  %v1040 = vsel %vm377, %v924, -inf
  %v1041 = vmax.f32 %v1039, %v1040
  %v1042 = vrot.slane %v1041, 4
  %v1043 = vmax.f32 %v1041, %v1042
  %v1044 = vrot.slane %v1043, 2
  %v1045 = vmax.f32 %v1043, %v1044
  %v1046 = vrot.slane %v1045, 1
  %v1047 = vmax.f32 %v1045, %v1046
  %v1048 = vsel %vm377, %v925, -inf
  %v1049 = vsel %vm377, %v926, -inf
  %v1050 = vmax.f32 %v1048, %v1049
  %v1051 = vrot.slane %v1050, 4
  %v1052 = vmax.f32 %v1050, %v1051
  %v1053 = vrot.slane %v1052, 2
  %v1054 = vmax.f32 %v1052, %v1053
  %v1055 = vrot.slane %v1054, 1
  %v1056 = vmax.f32 %v1054, %v1055
  %v1057 = vsel %vm377, %v927, -inf
  %v1058 = vsel %vm377, %v928, -inf
  %v1059 = vmax.f32 %v1057, %v1058
  %v1060 = vrot.slane %v1059, 4
  %v1061 = vmax.f32 %v1059, %v1060
  %v1062 = vrot.slane %v1061, 2
  %v1063 = vmax.f32 %v1061, %v1062
  %v1064 = vrot.slane %v1063, 1
  %v1065 = vmax.f32 %v1063, %v1064
  %v1066 = vsel %vm377, %v929, -inf
  %v1067 = vsel %vm377, %v930, -inf
  %v1068 = vmax.f32 %v1066, %v1067
  %v1069 = vrot.slane %v1068, 4
  %v1070 = vmax.f32 %v1068, %v1069
  %v1071 = vrot.slane %v1070, 2
  %v1072 = vmax.f32 %v1070, %v1071
  %v1073 = vrot.slane %v1072, 1
  %v1074 = vmax.f32 %v1072, %v1073
  %vm1091 = vcmask 1041409
  %v1092 = vsel %vm1091, %v948, %v939
  %vm1093 = vcmask 1042434
  %v1094 = vsel %vm1093, %v957, %v1092
  %vm1095 = vcmask 1043459
  %v1096 = vsel %vm1095, %v966, %v1094
  %vm1097 = vcmask 1044484
  %v1098 = vsel %vm1097, %v975, %v1096
  %vm1099 = vcmask 1045509
  %v1100 = vsel %vm1099, %v984, %v1098
  %vm1101 = vcmask 1046534
  %v1102 = vsel %vm1101, %v993, %v1100
  %vm1103 = vcmask 1047559
  %v1104 = vsel %vm1103, %v1002, %v1102
  %v1105 = vsel %vm1091, %v1020, %v1011
  %v1106 = vsel %vm1093, %v1029, %v1105
  %v1107 = vsel %vm1095, %v1038, %v1106
  %v1108 = vsel %vm1097, %v1047, %v1107
  %v1109 = vsel %vm1099, %v1056, %v1108
  %v1110 = vsel %vm1101, %v1065, %v1109
  %v1111 = vsel %vm1103, %v1074, %v1110
  %1114 = vxpose.xlu0.b32.start [1/16] %v1104, 128
  %1115 = vxpose.xlu0.b32.cont [2/16] %v1111, 128
  %1116 = vxpose.xlu0.b32.cont [3/16] 0.0, 128
  %1117 = vxpose.xlu0.b32.cont [4/16] 0.0, 128
  %1118 = vxpose.xlu0.b32.cont [5/16] 0.0, 128
  %1119 = vxpose.xlu0.b32.cont [6/16] 0.0, 128
  %1120 = vxpose.xlu0.b32.cont [7/16] 0.0, 128
  %1121 = vxpose.xlu0.b32.cont [8/16] 0.0, 128
  %1122 = vxpose.xlu0.b32.cont [9/16] 0.0, 128
  %1123 = vxpose.xlu0.b32.cont [10/16] 0.0, 128
  %1124 = vxpose.xlu0.b32.cont [11/16] 0.0, 128
  %1125 = vxpose.xlu0.b32.cont [12/16] 0.0, 128
  %1126 = vxpose.xlu0.b32.cont [13/16] 0.0, 128
  %1127 = vxpose.xlu0.b32.cont [14/16] 0.0, 128
  %1128 = vxpose.xlu0.b32.cont [15/16] 0.0, 128
  %1129 = vxpose.xlu0.b32.end [16/16] 0.0, 128
  %v1130 = vpop.trf.xlu0
  %v1131 = vpop.trf.xlu0
  %v1132 = vpop.trf.xlu0
  %v1133 = vpop.trf.xlu0
  %v1134 = vpop.trf.xlu0
  %v1135 = vpop.trf.xlu0
  %v1136 = vpop.trf.xlu0
  %v1137 = vpop.trf.xlu0
  %v1138 = vpop.trf.xlu0
  %v1139 = vpop.trf.xlu0
  %v1140 = vpop.trf.xlu0
  %v1141 = vpop.trf.xlu0
  %v1142 = vpop.trf.xlu0
  %v1143 = vpop.trf.xlu0
  %v1144 = vpop.trf.xlu0
  %v1145 = vpop.trf.xlu0
  %vm1146 = vcmask 130048
  %1147 = vst.msk [vmem:[%s7] sm:$0xff] %vm1146, %v1130
  %1148 = vst.msk [vmem:[%s7 + $0x8] sm:$0xff] %vm1146, %v1131
  %1149 = vst.msk [vmem:[%s7 + $0x10] sm:$0xff] %vm1146, %v1132
  %1150 = vst.msk [vmem:[%s7 + $0x18] sm:$0xff] %vm1146, %v1133
  // Predicated region
  $region30: #{tpu_custom_call.1} parent=0 // pred_check
    _
  $region31: #{tpu_custom_call.1} parent=0 // pred_check_branch
    %1152 = sbr.rel (0) target = $region33
  $region32: #{tpu_custom_call.1} parent=0 // pred_region
    _
  $region33: #{tpu_custom_call.1} parent=0 // pred_fallthru
    _
  // Predicated region
  $region34: #{tpu_custom_call.1} parent=0 // pred_check
    _
  $region35: #{tpu_custom_call.1} parent=0 // pred_check_branch
    %1154 = sbr.rel (0) target = $region37
  $region36: #{tpu_custom_call.1} parent=0 // pred_region
    _
  $region37: #{tpu_custom_call.1} parent=0 // pred_fallthru
    _

</llo_original>
